<compile_context>
chip_gen: v5e
topology: v5e:2x2
jax: 0.10.0
libtpu: 0.0.40
codegen_flags: <defaults>
</compile_context>

<pallas_src>
import jax
import jax.numpy as jnp
from jax.experimental import pallas as pl
from jax.experimental.pallas import tpu as pltpu


INPUT_DIM = 3
OUTPUT_DIM = 1
M = 20
MP = 24  # M padded up to a multiple of 8 sublanes

_LAYERS = (("w_in", "b_in"), ("w2", "b2"), ("w3", "b3"),
           ("w4", "b4"), ("w5", "b5"), ("w_out", "b_out"))


def deep_ritz_kernel(x_ref, w_ref, b_ref, o_ref):
    # x_ref: (MP, tile_b)    batch on lanes, zero-padded features on sublanes
    # w_ref: (6, MP, MP)     packed weights, (out, in) orientation, zero-padded
    # b_ref: (6, MP, 1)      packed biases, zero-padded
    # o_ref: (1, tile_b)     transposed output row (lane-dense)
    x = x_ref[...]

    def lin(l, v):
        # y^T = W @ v^T + b   (contraction over the padded feature axis)
        return jnp.dot(w_ref[l], v, preferred_element_type=jnp.float32) + b_ref[l]

    # y = tanh(linear_input(x))
    y = jnp.tanh(lin(0, x))
    # y = y + tanh(linear3(tanh(linear2(y))))
    y = y + jnp.tanh(lin(2, jnp.tanh(lin(1, y))))
    # y = y + tanh(linear5(tanh(linear4(y))))
    y = y + jnp.tanh(lin(4, jnp.tanh(lin(3, y))))
    # output = linear_output(y); only row 0 of the padded result is real.
    out = lin(5, y)
    o_ref[...] = out[0:1, :].astype(o_ref.dtype)


def pack_params(params):
    """Pack PyTorch-orientation params (W: (out,in), b: (out,)) into two
    zero-padded arrays: (6, MP, MP) weights and (6, MP, 1) biases."""
    wpack = jnp.zeros((6, MP, MP), dtype=jnp.float32)
    bpack = jnp.zeros((6, MP, 1), dtype=jnp.float32)
    for l, (wn, bn) in enumerate(_LAYERS):
        w = params[wn].astype(jnp.float32)
        b = params[bn].astype(jnp.float32)
        wpack = wpack.at[l, :w.shape[0], :w.shape[1]].set(w)
        bpack = bpack.at[l, :b.shape[0], 0].set(b)
    return wpack, bpack


def deep_ritz_forward(x, params, *, tile_b=256):
    """x: (N, INPUT_DIM) float32.  params: PyTorch-orientation weights/biases.
    Returns (N, OUTPUT_DIM) float32."""
    N = x.shape[0]
    n_pad = ((N + tile_b - 1) // tile_b) * tile_b

    # Transpose + zero-pad input so batch is on lanes, features on sublanes.
    xt = jnp.zeros((MP, n_pad), dtype=jnp.float32)
    xt = xt.at[:INPUT_DIM, :N].set(x.T.astype(jnp.float32))

    wpack, bpack = pack_params(params)

    grid = (n_pad // tile_b,)
    in_specs = [
        pl.BlockSpec((MP, tile_b), lambda i: (0, i)),          # x^T tile
        pl.BlockSpec((6, MP, MP), lambda i: (0, 0, 0)),        # packed weights
        pl.BlockSpec((6, MP, 1), lambda i: (0, 0, 0)),         # packed biases
    ]
    out_specs = pl.BlockSpec((1, tile_b), lambda i: (0, i))

    out_t = pl.pallas_call(
        deep_ritz_kernel,
        out_shape=jax.ShapeDtypeStruct((1, n_pad), jnp.float32),
        grid_spec=pltpu.PrefetchScalarGridSpec(
            num_scalar_prefetch=0,
            grid=grid,
            in_specs=in_specs,
            out_specs=out_specs,
        ),
        compiler_params=pltpu.CompilerParams(
            dimension_semantics=("parallel",),
            vmem_limit_bytes=32 * 1024 * 1024,
        ),
    )(xt, wpack, bpack)

    # Back to the module's (N, OUTPUT_DIM) layout.
    return out_t[0, :N][:, None]


def init_params(key):
    """PyTorch-Linear-like uniform fan-in init, stored in PyTorch orientation:
    W: (out_features, in_features), b: (out_features,)."""
    shapes = {
        "w_in": (M, INPUT_DIM), "b_in": (M,),
        "w2": (M, M), "b2": (M,),
        "w3": (M, M), "b3": (M,),
        "w4": (M, M), "b4": (M,),
        "w5": (M, M), "b5": (M,),
        "w_out": (OUTPUT_DIM, M), "b_out": (OUTPUT_DIM,),
    }
    fan_in = {
        "w_in": INPUT_DIM, "b_in": INPUT_DIM,
        "w2": M, "b2": M, "w3": M, "b3": M,
        "w4": M, "b4": M, "w5": M, "b5": M,
        "w_out": M, "b_out": M,
    }
    params = {}
    keys = jax.random.split(key, len(shapes))
    for k, name in zip(keys, sorted(shapes)):
        bound = 1.0 / float(fan_in[name]) ** 0.5
        params[name] = jax.random.uniform(
            k, shapes[name], dtype=jnp.float32, minval=-bound, maxval=bound)
    return params


def reference_forward(x, p):
    """Pure-JAX reference matching the PyTorch module semantics."""
    y = jnp.tanh(x @ p["w_in"].T + p["b_in"])
    y = y + jnp.tanh(jnp.tanh(y @ p["w2"].T + p["b2"]) @ p["w3"].T + p["b3"])
    y = y + jnp.tanh(jnp.tanh(y @ p["w4"].T + p["b4"]) @ p["w5"].T + p["b5"])
    return y @ p["w_out"].T + p["b_out"]


if __name__ == "__main__":
    key = jax.random.PRNGKey(0)
    k_x, k_p = jax.random.split(key)

    N = 512                     # 2 grid steps at tile_b=256 (keeps both v7x TCs busy)
    x = jax.random.normal(k_x, (N, INPUT_DIM), dtype=jnp.float32)
    params = init_params(k_p)

    out = deep_ritz_forward(x, params, tile_b=256)
    out = jax.block_until_ready(out)

    ref = reference_forward(x, params)
    assert out.shape == (N, OUTPUT_DIM)
    assert jnp.allclose(out, ref, atol=1e-5, rtol=1e-5)

    print("KERNEL_OK")
</pallas_src>

<mosaic_0001>
module attributes {stable_mosaic.version = 11 : i64} {
  func.func @deep_ritz_kernel(%arg0: i32, %arg1: memref<24x256xf32, #tpu.memory_space<vmem>>, %arg2: memref<6x24x24xf32, #tpu.memory_space<vmem>>, %arg3: memref<6x24x1xf32, #tpu.memory_space<vmem>>, %arg4: memref<1x256xf32, #tpu.memory_space<vmem>>) attributes {dimension_semantics = [#tpu.dimension_semantics<parallel>], iteration_bounds = array<i64: 2>, scalar_prefetch = 0 : i64, scratch_operands = 0 : i64, tpu.core_type = #tpu.core_type<tc>, window_params = [{transform_indices = @transform_0, window_bounds = array<i64: 24, 256>}, {pipeline_mode = #tpu.pipeline_mode<synchronous>, transform_indices = @transform_1, window_bounds = array<i64: 6, 24, 24>}, {pipeline_mode = #tpu.pipeline_mode<synchronous>, transform_indices = @transform_2, window_bounds = array<i64: 6, 24, 1>}, {transform_indices = @transform_3, window_bounds = array<i64: 1, 256>}]} {
    %c0 = arith.constant 0 : index
    %c0_0 = arith.constant 0 : index
    %0 = vector.load %arg1[%c0, %c0_0] : memref<24x256xf32, #tpu.memory_space<vmem>>, vector<24x256xf32>
    %c0_1 = arith.constant 0 : index
    %c0_2 = arith.constant 0 : index
    %c0_3 = arith.constant 0 : index
    %1 = vector.load %arg2[%c0_1, %c0_2, %c0_3] : memref<6x24x24xf32, #tpu.memory_space<vmem>>, vector<1x24x24xf32>
    %2 = vector.shape_cast %1 : vector<1x24x24xf32> to vector<24x24xf32>
    %cst = arith.constant dense<0.000000e+00> : vector<24x256xf32>
    %3 = tpu.matmul %2, %0, %cst {dimension_numbers = #tpu.dot_dimension_numbers<[1], [0], [0], [1], [0, 0, 1, 1], [], []>} : vector<24x24xf32>, vector<24x256xf32>, vector<24x256xf32> -> vector<24x256xf32>
    %c0_4 = arith.constant 0 : index
    %c0_5 = arith.constant 0 : index
    %c0_6 = arith.constant 0 : index
    %4 = vector.load %arg3[%c0_4, %c0_5, %c0_6] : memref<6x24x1xf32, #tpu.memory_space<vmem>>, vector<1x24x1xf32>
    %5 = vector.shape_cast %4 : vector<1x24x1xf32> to vector<24x1xf32>
    %6 = vector.broadcast %5 : vector<24x1xf32> to vector<24x256xf32>
    %7 = arith.addf %3, %6 : vector<24x256xf32>
    %8 = math.tanh %7 : vector<24x256xf32>
    %c1 = arith.constant 1 : index
    %c0_7 = arith.constant 0 : index
    %c0_8 = arith.constant 0 : index
    %9 = vector.load %arg2[%c1, %c0_7, %c0_8] : memref<6x24x24xf32, #tpu.memory_space<vmem>>, vector<1x24x24xf32>
    %10 = vector.shape_cast %9 : vector<1x24x24xf32> to vector<24x24xf32>
    %cst_9 = arith.constant dense<0.000000e+00> : vector<24x256xf32>
    %11 = tpu.matmul %10, %8, %cst_9 {dimension_numbers = #tpu.dot_dimension_numbers<[1], [0], [0], [1], [0, 0, 1, 1], [], []>} : vector<24x24xf32>, vector<24x256xf32>, vector<24x256xf32> -> vector<24x256xf32>
    %c1_10 = arith.constant 1 : index
    %c0_11 = arith.constant 0 : index
    %c0_12 = arith.constant 0 : index
    %12 = vector.load %arg3[%c1_10, %c0_11, %c0_12] : memref<6x24x1xf32, #tpu.memory_space<vmem>>, vector<1x24x1xf32>
    %13 = vector.shape_cast %12 : vector<1x24x1xf32> to vector<24x1xf32>
    %14 = vector.broadcast %13 : vector<24x1xf32> to vector<24x256xf32>
    %15 = arith.addf %11, %14 : vector<24x256xf32>
    %16 = math.tanh %15 : vector<24x256xf32>
    %c2 = arith.constant 2 : index
    %c0_13 = arith.constant 0 : index
    %c0_14 = arith.constant 0 : index
    %17 = vector.load %arg2[%c2, %c0_13, %c0_14] : memref<6x24x24xf32, #tpu.memory_space<vmem>>, vector<1x24x24xf32>
    %18 = vector.shape_cast %17 : vector<1x24x24xf32> to vector<24x24xf32>
    %cst_15 = arith.constant dense<0.000000e+00> : vector<24x256xf32>
    %19 = tpu.matmul %18, %16, %cst_15 {dimension_numbers = #tpu.dot_dimension_numbers<[1], [0], [0], [1], [0, 0, 1, 1], [], []>} : vector<24x24xf32>, vector<24x256xf32>, vector<24x256xf32> -> vector<24x256xf32>
    %c2_16 = arith.constant 2 : index
    %c0_17 = arith.constant 0 : index
    %c0_18 = arith.constant 0 : index
    %20 = vector.load %arg3[%c2_16, %c0_17, %c0_18] : memref<6x24x1xf32, #tpu.memory_space<vmem>>, vector<1x24x1xf32>
    %21 = vector.shape_cast %20 : vector<1x24x1xf32> to vector<24x1xf32>
    %22 = vector.broadcast %21 : vector<24x1xf32> to vector<24x256xf32>
    %23 = arith.addf %19, %22 : vector<24x256xf32>
    %24 = math.tanh %23 : vector<24x256xf32>
    %25 = arith.addf %8, %24 : vector<24x256xf32>
    %c3 = arith.constant 3 : index
    %c0_19 = arith.constant 0 : index
    %c0_20 = arith.constant 0 : index
    %26 = vector.load %arg2[%c3, %c0_19, %c0_20] : memref<6x24x24xf32, #tpu.memory_space<vmem>>, vector<1x24x24xf32>
    %27 = vector.shape_cast %26 : vector<1x24x24xf32> to vector<24x24xf32>
    %cst_21 = arith.constant dense<0.000000e+00> : vector<24x256xf32>
    %28 = tpu.matmul %27, %25, %cst_21 {dimension_numbers = #tpu.dot_dimension_numbers<[1], [0], [0], [1], [0, 0, 1, 1], [], []>} : vector<24x24xf32>, vector<24x256xf32>, vector<24x256xf32> -> vector<24x256xf32>
    %c3_22 = arith.constant 3 : index
    %c0_23 = arith.constant 0 : index
    %c0_24 = arith.constant 0 : index
    %29 = vector.load %arg3[%c3_22, %c0_23, %c0_24] : memref<6x24x1xf32, #tpu.memory_space<vmem>>, vector<1x24x1xf32>
    %30 = vector.shape_cast %29 : vector<1x24x1xf32> to vector<24x1xf32>
    %31 = vector.broadcast %30 : vector<24x1xf32> to vector<24x256xf32>
    %32 = arith.addf %28, %31 : vector<24x256xf32>
    %33 = math.tanh %32 : vector<24x256xf32>
    %c4 = arith.constant 4 : index
    %c0_25 = arith.constant 0 : index
    %c0_26 = arith.constant 0 : index
    %34 = vector.load %arg2[%c4, %c0_25, %c0_26] : memref<6x24x24xf32, #tpu.memory_space<vmem>>, vector<1x24x24xf32>
    %35 = vector.shape_cast %34 : vector<1x24x24xf32> to vector<24x24xf32>
    %cst_27 = arith.constant dense<0.000000e+00> : vector<24x256xf32>
    %36 = tpu.matmul %35, %33, %cst_27 {dimension_numbers = #tpu.dot_dimension_numbers<[1], [0], [0], [1], [0, 0, 1, 1], [], []>} : vector<24x24xf32>, vector<24x256xf32>, vector<24x256xf32> -> vector<24x256xf32>
    %c4_28 = arith.constant 4 : index
    %c0_29 = arith.constant 0 : index
    %c0_30 = arith.constant 0 : index
    %37 = vector.load %arg3[%c4_28, %c0_29, %c0_30] : memref<6x24x1xf32, #tpu.memory_space<vmem>>, vector<1x24x1xf32>
    %38 = vector.shape_cast %37 : vector<1x24x1xf32> to vector<24x1xf32>
    %39 = vector.broadcast %38 : vector<24x1xf32> to vector<24x256xf32>
    %40 = arith.addf %36, %39 : vector<24x256xf32>
    %41 = math.tanh %40 : vector<24x256xf32>
    %42 = arith.addf %25, %41 : vector<24x256xf32>
    %c5 = arith.constant 5 : index
    %c0_31 = arith.constant 0 : index
    %c0_32 = arith.constant 0 : index
    %43 = vector.load %arg2[%c5, %c0_31, %c0_32] : memref<6x24x24xf32, #tpu.memory_space<vmem>>, vector<1x24x24xf32>
    %44 = vector.shape_cast %43 : vector<1x24x24xf32> to vector<24x24xf32>
    %cst_33 = arith.constant dense<0.000000e+00> : vector<24x256xf32>
    %45 = tpu.matmul %44, %42, %cst_33 {dimension_numbers = #tpu.dot_dimension_numbers<[1], [0], [0], [1], [0, 0, 1, 1], [], []>} : vector<24x24xf32>, vector<24x256xf32>, vector<24x256xf32> -> vector<24x256xf32>
    %c5_34 = arith.constant 5 : index
    %c0_35 = arith.constant 0 : index
    %c0_36 = arith.constant 0 : index
    %46 = vector.load %arg3[%c5_34, %c0_35, %c0_36] : memref<6x24x1xf32, #tpu.memory_space<vmem>>, vector<1x24x1xf32>
    %47 = vector.shape_cast %46 : vector<1x24x1xf32> to vector<24x1xf32>
    %48 = vector.broadcast %47 : vector<24x1xf32> to vector<24x256xf32>
    %49 = arith.addf %45, %48 : vector<24x256xf32>
    %50 = vector.extract_strided_slice %49 {offsets = [0, 0], sizes = [1, 256], strides = [1, 1]} : vector<24x256xf32> to vector<1x256xf32>
    %c0_37 = arith.constant 0 : index
    %c0_38 = arith.constant 0 : index
    %51 = vector.load %arg4[%c0_37, %c0_38] : memref<1x256xf32, #tpu.memory_space<vmem>>, vector<1x256xf32>
    tpu.vector_store %arg4[%c0_37, %c0_38], %50 {strides = array<i32>} : memref<1x256xf32, #tpu.memory_space<vmem>>, vector<1x256xf32>,
    return
  }
  func.func @transform_0(%arg0: i32) -> (i32, i32) {
    %c0_i32 = arith.constant 0 : i32
    %c0_i32_0 = arith.constant 0 : i32
    return %c0_i32, %arg0 : i32, i32
  }
  func.func @transform_1(%arg0: i32) -> (i32, i32, i32) {
    %c0_i32 = arith.constant 0 : i32
    %c0_i32_0 = arith.constant 0 : i32
    %c0_i32_1 = arith.constant 0 : i32
    %c0_i32_2 = arith.constant 0 : i32
    return %c0_i32, %c0_i32_0, %c0_i32_1 : i32, i32, i32
  }
  func.func @transform_2(%arg0: i32) -> (i32, i32, i32) {
    %c0_i32 = arith.constant 0 : i32
    %c0_i32_0 = arith.constant 0 : i32
    %c0_i32_1 = arith.constant 0 : i32
    %c0_i32_2 = arith.constant 0 : i32
    return %c0_i32, %c0_i32_0, %c0_i32_1 : i32, i32, i32
  }
  func.func @transform_3(%arg0: i32) -> (i32, i32) {
    %c0_i32 = arith.constant 0 : i32
    %c0_i32_0 = arith.constant 0 : i32
    return %c0_i32, %arg0 : i32, i32
  }
}

</mosaic_0001>

<llo_original>
// kernel: tpu_custom_call.1
$region0: #{tpu_custom_call.1}
  #allocation0 [shape = 'u32[]', space=smem, size = 0x4, offset = 0x4, fixed_abs, tag = 'smem constant byte address 0x4 - core index']
  #allocation1 [shape = 'u32[72,128]{1,0:T(1,128)}', space=vmem, size = 0x9000, scoped, tag = 'internal scratch']
  %s0 = inlined_call_operand.hbm [shape: f32[24,512], index: 0, kind: input, shape index: {}]
  %s1 = inlined_call_operand.vmem [shape: f32[6,24,24], index: 1, kind: input, shape index: {}]
  %s2 = inlined_call_operand.vmem [shape: f32[6,24,1], index: 2, kind: input, shape index: {}]
  %s3 = inlined_call_operand.hbm [shape: f32[1,512], index: 3, kind: output, shape index: {}]
  %s4 = sld [smem:[#allocation0]]
  $region49: #{tpu_custom_call.1} parent=0
    _
  %s6 = ssub.s32 1, %s4
  %s7 = scalar_select 0, %s6, %s4
  $region1: #{tpu_custom_call.1} parent=0
    #allocation2 [shape = 'u8[49152]{0}', space=vmem, size = 0xc000, scoped, tag = 'input window, operand 0']
    #allocation3 [shape = 's32[2]{0}', space=sflag, size = 0x8, scoped, tag = 'scoped memory for tpu_custom_call.1']
    #allocation4 [shape = 's32[2]{0}', space=sflag, size = 0x8, scoped, tag = 'scoped memory for tpu_custom_call.1']
    #allocation5 [shape = 'u8[2048]{0}', space=vmem, size = 0x800, scoped, tag = 'output window, operand 0']
    %8 = vsyncpa [#allocation3], 0
    %s9 = scalar_lea.sflag [#allocation3], 1
    %10 = vsyncpa %s9, 0
    %11 = vsyncpa [#allocation4], 0
    %s12 = scalar_lea.sflag [#allocation4], 1
    %13 = vsyncpa %s12, 0
    loop: start=0, step=1, limit=4
    $region2: #{tpu_custom_call.1} parent=1 // loop_pre_header
      _
    $region3: #{tpu_custom_call.1} parent=1 // loop_header
      %s15 = sphi 0, %s19
      %p16 = scmp.ge.s32.totalorder %s15, 4
      %s25 = sphi 0, %s27
      %s28 = sphi 0, %s25
      %s29 = sphi 0, %s28
      %s45 = sphi 0, %s29
      %s49 = sphi 0, %s49
      %s51 = sphi 0, %s49
      %s52 = sphi 0, %s51
      %s66 = sphi 0, %s52
      %s70 = sphi 0, %s70
      %s72 = sphi 0, %s70
      %s73 = sphi 0, %s72
      %s87 = sphi 0, %s73
      %s93 = sphi 0, %s95
      %s96 = sphi 0, %s93
      %s97 = sphi 0, %s96
      %s113 = sphi 0, %s97
    $region4: #{tpu_custom_call.1} parent=1 // loop_header_branch
      %18 = sbr.rel (%p16) target = $region8
    $region5: #{tpu_custom_call.1} parent=1 // loop_body
      %s20 = ssub.s32 %s15, 1
      %s21 = ssub.s32 %s15, 2
      %s22 = sadd.s32 %s15, 1
      %s23 = ssub.s32 %s15, %s22
      %p24 = scmp.eq.s32.totalorder %s23, 0
      %s26 = sadd.s32 %s25, 1
      %s27 = scalar_select %p24, %s25, %s26
      %p30 = pneg %p24
      %p31 = scmp.eq.s32.totalorder %s15, 1
      %p32 = por %p30, %p31
      %p33 = scmp.ne.s32.totalorder %s25, %s28
      %p34 = scmp.eq.s32.totalorder %s15, 0
      %p35 = por %p33, %p34
      %p36 = scmp.ne.s32.totalorder %s25, %s28
      %p37 = scmp.eq.s32.totalorder %s20, 1
      %p38 = por %p36, %p37
      %p39 = scmp.ne.s32.totalorder %s28, %s29
      %p40 = scmp.eq.s32.totalorder %s20, 0
      %p41 = por %p39, %p40
      %p42 = scmp.ne.s32.totalorder %s28, %s29
      %p43 = scmp.eq.s32.totalorder %s21, 1
      %p44 = por %p42, %p43
      %p46 = scmp.ne.s32.totalorder %s29, %s45
      %p47 = scmp.eq.s32.totalorder %s21, 0
      %p48 = por %p46, %p47
      %s50 = sadd.s32 %s49, 1
      %p53 = scmp.eq.s32.totalorder %s15, 1
      %p54 = scmp.ne.s32.totalorder %s49, %s51
      %p55 = scmp.eq.s32.totalorder %s15, 0
      %p56 = por %p54, %p55
      %p57 = scmp.ne.s32.totalorder %s49, %s51
      %p58 = scmp.eq.s32.totalorder %s20, 1
      %p59 = por %p57, %p58
      %p60 = scmp.ne.s32.totalorder %s51, %s52
      %p61 = scmp.eq.s32.totalorder %s20, 0
      %p62 = por %p60, %p61
      %p63 = scmp.ne.s32.totalorder %s51, %s52
      %p64 = scmp.eq.s32.totalorder %s21, 1
      %p65 = por %p63, %p64
      %p67 = scmp.ne.s32.totalorder %s52, %s66
      %p68 = scmp.eq.s32.totalorder %s21, 0
      %p69 = por %p67, %p68
      %s71 = sadd.s32 %s70, 1
      %p74 = scmp.eq.s32.totalorder %s15, 1
      %p75 = scmp.ne.s32.totalorder %s70, %s72
      %p76 = scmp.eq.s32.totalorder %s15, 0
      %p77 = por %p75, %p76
      %p78 = scmp.ne.s32.totalorder %s70, %s72
      %p79 = scmp.eq.s32.totalorder %s20, 1
      %p80 = por %p78, %p79
      %p81 = scmp.ne.s32.totalorder %s72, %s73
      %p82 = scmp.eq.s32.totalorder %s20, 0
      %p83 = por %p81, %p82
      %p84 = scmp.ne.s32.totalorder %s72, %s73
      %p85 = scmp.eq.s32.totalorder %s21, 1
      %p86 = por %p84, %p85
      %p88 = scmp.ne.s32.totalorder %s73, %s87
      %p89 = scmp.eq.s32.totalorder %s21, 0
      %p90 = por %p88, %p89
      %s91 = ssub.s32 %s15, %s22
      %p92 = scmp.eq.s32.totalorder %s91, 0
      %s94 = sadd.s32 %s93, 1
      %s95 = scalar_select %p92, %s93, %s94
      %p98 = pneg %p92
      %p99 = scmp.eq.s32.totalorder %s15, 1
      %p100 = por %p98, %p99
      %p101 = scmp.ne.s32.totalorder %s93, %s96
      %p102 = scmp.eq.s32.totalorder %s15, 0
      %p103 = por %p101, %p102
      %p104 = scmp.ne.s32.totalorder %s93, %s96
      %p105 = scmp.eq.s32.totalorder %s20, 1
      %p106 = por %p104, %p105
      %p107 = scmp.ne.s32.totalorder %s96, %s97
      %p108 = scmp.eq.s32.totalorder %s20, 0
      %p109 = por %p107, %p108
      %p110 = scmp.ne.s32.totalorder %s96, %s97
      %p111 = scmp.eq.s32.totalorder %s21, 1
      %p112 = por %p110, %p111
      %p114 = scmp.ne.s32.totalorder %s97, %s113
      %p115 = scmp.eq.s32.totalorder %s21, 0
      %p116 = por %p114, %p115
      %p117 = scmp.le.s32.totalorder 1, %s15
      %p118 = scmp.lt.s32.totalorder %s15, 3
      %p119 = pnand %p117, %p118
      %p120 = pneg %p119
      // Predicated region
      $region9: #{tpu_custom_call.1} parent=5 // pred_check
        _
      $region10: #{tpu_custom_call.1} parent=5 // pred_check_branch
        %122 = sbr.rel (%p119) target = $region12
      $region11: #{tpu_custom_call.1} parent=5 // pred_region
        %s123 = ssub.s32 %s15, 1
        // Predicated region
        $region13: #{tpu_custom_call.1} parent=11 // pred_check
          %p124 = pneg %p62
        $region14: #{tpu_custom_call.1} parent=11 // pred_check_branch
          %126 = sbr.rel (%p124) target = $region16
        $region15: #{tpu_custom_call.1} parent=11 // pred_region
          _
        $region16: #{tpu_custom_call.1} parent=11 // pred_fallthru
          _
        // Predicated region
        $region17: #{tpu_custom_call.1} parent=11 // pred_check
          %p127 = pneg %p83
        $region18: #{tpu_custom_call.1} parent=11 // pred_check_branch
          %129 = sbr.rel (%p127) target = $region20
        $region19: #{tpu_custom_call.1} parent=11 // pred_region
          _
        $region20: #{tpu_custom_call.1} parent=11 // pred_fallthru
          _
      $region12: #{tpu_custom_call.1} parent=5 // pred_fallthru
        _
      %p130 = scmp.lt.s32.totalorder %s15, 2
      // Predicated region
      $region21: #{tpu_custom_call.1} parent=5 // pred_check
        %p131 = pneg %p130
      $region22: #{tpu_custom_call.1} parent=5 // pred_check_branch
        %133 = sbr.rel (%p131) target = $region24
      $region23: #{tpu_custom_call.1} parent=5 // pred_region
        // Predicated region
        $region25: #{tpu_custom_call.1} parent=23 // pred_check
          %p134 = pneg %p35
        $region26: #{tpu_custom_call.1} parent=23 // pred_check_branch
          %136 = sbr.rel (%p134) target = $region28
        $region27: #{tpu_custom_call.1} parent=23 // pred_region
          %s137 = sand.u32 %s25, 1
          %s138 = scalar_lea.sflag [#allocation3], %s137
          %s139 = sand.u32 %s25, 1
          %s140 = smul.addr %s139, 48
          %s141 = scalar_lea.vmem [#allocation2], %s140
          %s142 = smul.u32 2, %s15
          %144 = vsyncadd %s138, 0
          %s145 = smul.addr %s142, 8
          %s146 = scalar_lea.hbm %s0, %s145
          %s147 = sshll.u32 %s146, 4
          %s148 = int_to_ptr.hbm [resolvable:$true] %s147
          %s149 = sshll.u32 %s141, 4
          %s150 = int_to_ptr.vmem [resolvable:$true] %s149
          %155 = dma.hbm_to_vmem [thread:$0]  %s148, 768, %s150, %s138, 512, 256, 16
        $region28: #{tpu_custom_call.1} parent=23 // pred_fallthru
          _
      $region24: #{tpu_custom_call.1} parent=5 // pred_fallthru
        _
      %p156 = scmp.le.s32.totalorder 1, %s15
      %p157 = scmp.lt.s32.totalorder %s15, 3
      %p158 = pnand %p156, %p157
      %p159 = pneg %p158
      // Predicated region
      $region29: #{tpu_custom_call.1} parent=5 // pred_check
        _
      $region30: #{tpu_custom_call.1} parent=5 // pred_check_branch
        %161 = sbr.rel (%p158) target = $region32
      $region31: #{tpu_custom_call.1} parent=5 // pred_region
        %s162 = ssub.s32 %s15, 1
        %s163 = sand.u32 %s28, 1
        %s164 = scalar_lea.sflag [#allocation3], %s163
        %s165 = sand.u32 %s28, 1
        %s166 = smul.addr %s165, 48
        %s167 = scalar_lea.vmem [#allocation2], %s166
        // Predicated region
        $region33: #{tpu_custom_call.1} parent=31 // pred_check
          %p168 = pneg %p41
        $region34: #{tpu_custom_call.1} parent=31 // pred_check_branch
          %170 = sbr.rel (%p168) target = $region36
        $region35: #{tpu_custom_call.1} parent=31 // pred_region
          %172 = dma.done %s164, 768
        $region36: #{tpu_custom_call.1} parent=31 // pred_fallthru
          _
        %s173 = sand.u32 %s28, 1
        %s174 = scalar_lea.sflag [#allocation3], %s173
        %s175 = sand.u32 %s28, 1
        %s176 = smul.addr %s175, 48
        %s177 = scalar_lea.vmem [#allocation2], %s176
        %p178 = pneg %p41
        %p179 = pneg %p38
        %p180 = pneg %p62
        %p181 = pneg %p59
        %p182 = pneg %p83
        %p183 = pneg %p80
        %p184 = pneg %p109
        %p185 = pneg %p106
        %s186 = sand.u32 %s96, 1
        %s187 = scalar_lea.sflag [#allocation4], %s186
        %s188 = sand.u32 %s96, 1
        %s189 = smul.addr %s188, 2
        %s190 = scalar_lea.vmem [#allocation5], %s189
        %s191 = smul.u32 2, %s20
        %s192 = smul.u32 2, %s20
        %v193 = vld [vmem:[%s167] sm:$0xff]
        %v194 = vld [vmem:[%s167 + $0x8] sm:$0xff]
        %v195 = vld [vmem:[%s167 + $0x10] sm:$0xff]
        %v196 = vld [vmem:[%s167 + $0x18] sm:$0xff]
        %v197 = vld [vmem:[%s167 + $0x20] sm:$0xff]
        %v198 = vld [vmem:[%s167 + $0x28] sm:$0xff]
        %v199 = vld [vmem:[%s1] sm:$0xff]
        %v200 = vld [vmem:[%s1 + $0x8] sm:$0xff]
        %v201 = vld [vmem:[%s1 + $0x10] sm:$0xff]
        %v202 = vld [vmem:[%s2] sm:$0xff]
        %v203 = vld [vmem:[%s2 + $0x8] sm:$0xff]
        %v204 = vld [vmem:[%s2 + $0x10] sm:$0xff]
        %206 = vset.pattern.permute.xlu0 0
        %207 = vperm.xlu0 %206, %v202
        %v208 = vpop.permute.xlu0 %207
        %211 = vset.pattern.permute.xlu0 0
        %212 = vperm.xlu0 %211, %v203
        %v213 = vpop.permute.xlu0 %212
        %216 = vset.pattern.permute.xlu0 0
        %217 = vperm.xlu0 %216, %v204
        %v218 = vpop.permute.xlu0 %217
        %vm220 = vcmask 195584
        %v222 = vsel %vm220, %v199, 0
        %v225 = vsel %vm220, %v200, 0
        %v228 = vsel %vm220, %v201, 0
        %230 = vmatpush.msra.mxu0 0.0
        %231 = vmatpush.msra.mxu0 0.0
        %232 = vmatpush.msra.mxu0 0.0
        %233 = vmatpush.msra.mxu0 0.0
        %234 = vmatpush.msra.mxu0 0.0
        %235 = vmatpush.msra.mxu0 0.0
        %236 = vmatpush.msra.mxu0 0.0
        %237 = vmatpush.msra.mxu0 0.0
        %238 = vmatpush.msra.mxu0 0.0
        %239 = vmatpush.msra.mxu0 0.0
        %240 = vmatpush.msra.mxu0 0.0
        %241 = vmatpush.msra.mxu0 0.0
        %242 = vmatpush.msra.mxu0 0.0
        %243 = vmatpush.msra.mxu0 %v197
        %244 = vmatpush.msra.mxu0 %v195
        %245 = vmatpush.msra.mxu0 %v193
        %246 = vmatmul.f32.gmra.mxu0 %v222
        %v247 = vpop.f32.mrf.mxu0
        %v248 = vadd.f32 %v208, %v247
        %249 = vmatmul.f32.gmra.mxu0 %v225
        %v250 = vpop.f32.mrf.mxu0
        %v251 = vadd.f32 %v213, %v250
        %252 = vmatmul.f32.gmra.mxu0 %v228
        %v253 = vpop.f32.mrf.mxu0
        %v254 = vadd.f32 %v218, %v253
        %255 = vdwg.mxu0
        %256 = vmatpush.msra.mxu0 0.0
        %257 = vmatpush.msra.mxu0 0.0
        %258 = vmatpush.msra.mxu0 0.0
        %259 = vmatpush.msra.mxu0 0.0
        %260 = vmatpush.msra.mxu0 0.0
        %261 = vmatpush.msra.mxu0 0.0
        %262 = vmatpush.msra.mxu0 0.0
        %263 = vmatpush.msra.mxu0 0.0
        %264 = vmatpush.msra.mxu0 0.0
        %265 = vmatpush.msra.mxu0 0.0
        %266 = vmatpush.msra.mxu0 0.0
        %267 = vmatpush.msra.mxu0 0.0
        %268 = vmatpush.msra.mxu0 0.0
        %269 = vmatpush.msra.mxu0 %v198
        %270 = vmatpush.msra.mxu0 %v196
        %271 = vmatpush.msra.mxu0 %v194
        %272 = vmatmul.f32.gmra.mxu0 %v222
        %v273 = vpop.f32.mrf.mxu0
        %v274 = vadd.f32 %v208, %v273
        %275 = vmatmul.f32.gmra.mxu0 %v225
        %v276 = vpop.f32.mrf.mxu0
        %v277 = vadd.f32 %v213, %v276
        %278 = vmatmul.f32.gmra.mxu0 %v228
        %v279 = vpop.f32.mrf.mxu0
        %v280 = vadd.f32 %v218, %v279
        %281 = vdwg.mxu0
        %v282 = vtanh.pop %v248
        %v283 = vtanh.pop %v274
        %v284 = vtanh.pop %v251
        %v285 = vtanh.pop %v277
        %v286 = vtanh.pop %v254
        %v287 = vtanh.pop %v280
        %s288 = scalar_lea.vmem %s1, 24
        %v289 = vld [vmem:[%s288] sm:$0xff]
        %v290 = vld [vmem:[%s288 + $0x8] sm:$0xff]
        %v291 = vld [vmem:[%s288 + $0x10] sm:$0xff]
        %s292 = scalar_lea.vmem %s2, 24
        %v293 = vld [vmem:[%s292] sm:$0xff]
        %v294 = vld [vmem:[%s292 + $0x8] sm:$0xff]
        %v295 = vld [vmem:[%s292 + $0x10] sm:$0xff]
        %297 = vset.pattern.permute.xlu0 0
        %298 = vperm.xlu0 %297, %v293
        %v299 = vpop.permute.xlu0 %298
        %302 = vset.pattern.permute.xlu0 0
        %303 = vperm.xlu0 %302, %v294
        %v304 = vpop.permute.xlu0 %303
        %307 = vset.pattern.permute.xlu0 0
        %308 = vperm.xlu0 %307, %v295
        %v309 = vpop.permute.xlu0 %308
        %v312 = vsel %vm220, %v289, 0
        %v315 = vsel %vm220, %v290, 0
        %v318 = vsel %vm220, %v291, 0
        %320 = vmatpush.msra.mxu0 0.0
        %321 = vmatpush.msra.mxu0 0.0
        %322 = vmatpush.msra.mxu0 0.0
        %323 = vmatpush.msra.mxu0 0.0
        %324 = vmatpush.msra.mxu0 0.0
        %325 = vmatpush.msra.mxu0 0.0
        %326 = vmatpush.msra.mxu0 0.0
        %327 = vmatpush.msra.mxu0 0.0
        %328 = vmatpush.msra.mxu0 0.0
        %329 = vmatpush.msra.mxu0 0.0
        %330 = vmatpush.msra.mxu0 0.0
        %331 = vmatpush.msra.mxu0 0.0
        %332 = vmatpush.msra.mxu0 0.0
        %333 = vmatpush.msra.mxu0 %v286
        %334 = vmatpush.msra.mxu0 %v284
        %335 = vmatpush.msra.mxu0 %v282
        %336 = vmatmul.f32.gmra.mxu0 %v312
        %v337 = vpop.f32.mrf.mxu0
        %v338 = vadd.f32 %v299, %v337
        %339 = vmatmul.f32.gmra.mxu0 %v315
        %v340 = vpop.f32.mrf.mxu0
        %v341 = vadd.f32 %v304, %v340
        %342 = vmatmul.f32.gmra.mxu0 %v318
        %v343 = vpop.f32.mrf.mxu0
        %v344 = vadd.f32 %v309, %v343
        %345 = vdwg.mxu0
        %346 = vmatpush.msra.mxu0 0.0
        %347 = vmatpush.msra.mxu0 0.0
        %348 = vmatpush.msra.mxu0 0.0
        %349 = vmatpush.msra.mxu0 0.0
        %350 = vmatpush.msra.mxu0 0.0
        %351 = vmatpush.msra.mxu0 0.0
        %352 = vmatpush.msra.mxu0 0.0
        %353 = vmatpush.msra.mxu0 0.0
        %354 = vmatpush.msra.mxu0 0.0
        %355 = vmatpush.msra.mxu0 0.0
        %356 = vmatpush.msra.mxu0 0.0
        %357 = vmatpush.msra.mxu0 0.0
        %358 = vmatpush.msra.mxu0 0.0
        %359 = vmatpush.msra.mxu0 %v287
        %360 = vmatpush.msra.mxu0 %v285
        %361 = vmatpush.msra.mxu0 %v283
        %362 = vmatmul.f32.gmra.mxu0 %v312
        %v363 = vpop.f32.mrf.mxu0
        %v364 = vadd.f32 %v299, %v363
        %365 = vmatmul.f32.gmra.mxu0 %v315
        %v366 = vpop.f32.mrf.mxu0
        %v367 = vadd.f32 %v304, %v366
        %368 = vmatmul.f32.gmra.mxu0 %v318
        %v369 = vpop.f32.mrf.mxu0
        %v370 = vadd.f32 %v309, %v369
        %371 = vdwg.mxu0
        %v372 = vtanh.pop %v338
        %v373 = vtanh.pop %v364
        %v374 = vtanh.pop %v341
        %v375 = vtanh.pop %v367
        %v376 = vtanh.pop %v344
        %v377 = vtanh.pop %v370
        %s378 = scalar_lea.vmem %s1, 48
        %v379 = vld [vmem:[%s378] sm:$0xff]
        %v380 = vld [vmem:[%s378 + $0x8] sm:$0xff]
        %v381 = vld [vmem:[%s378 + $0x10] sm:$0xff]
        %s382 = scalar_lea.vmem %s2, 48
        %v383 = vld [vmem:[%s382] sm:$0xff]
        %v384 = vld [vmem:[%s382 + $0x8] sm:$0xff]
        %v385 = vld [vmem:[%s382 + $0x10] sm:$0xff]
        %387 = vset.pattern.permute.xlu0 0
        %388 = vperm.xlu0 %387, %v383
        %v389 = vpop.permute.xlu0 %388
        %392 = vset.pattern.permute.xlu0 0
        %393 = vperm.xlu0 %392, %v384
        %v394 = vpop.permute.xlu0 %393
        %397 = vset.pattern.permute.xlu0 0
        %398 = vperm.xlu0 %397, %v385
        %v399 = vpop.permute.xlu0 %398
        %v402 = vsel %vm220, %v379, 0
        %v405 = vsel %vm220, %v380, 0
        %v408 = vsel %vm220, %v381, 0
        %410 = vmatpush.msra.mxu0 0.0
        %411 = vmatpush.msra.mxu0 0.0
        %412 = vmatpush.msra.mxu0 0.0
        %413 = vmatpush.msra.mxu0 0.0
        %414 = vmatpush.msra.mxu0 0.0
        %415 = vmatpush.msra.mxu0 0.0
        %416 = vmatpush.msra.mxu0 0.0
        %417 = vmatpush.msra.mxu0 0.0
        %418 = vmatpush.msra.mxu0 0.0
        %419 = vmatpush.msra.mxu0 0.0
        %420 = vmatpush.msra.mxu0 0.0
        %421 = vmatpush.msra.mxu0 0.0
        %422 = vmatpush.msra.mxu0 0.0
        %423 = vmatpush.msra.mxu0 %v376
        %424 = vmatpush.msra.mxu0 %v374
        %425 = vmatpush.msra.mxu0 %v372
        %426 = vmatmul.f32.gmra.mxu0 %v402
        %v427 = vpop.f32.mrf.mxu0
        %v428 = vadd.f32 %v389, %v427
        %429 = vmatmul.f32.gmra.mxu0 %v405
        %v430 = vpop.f32.mrf.mxu0
        %v431 = vadd.f32 %v394, %v430
        %432 = vmatmul.f32.gmra.mxu0 %v408
        %v433 = vpop.f32.mrf.mxu0
        %v434 = vadd.f32 %v399, %v433
        %435 = vdwg.mxu0
        %436 = vmatpush.msra.mxu0 0.0
        %437 = vmatpush.msra.mxu0 0.0
        %438 = vmatpush.msra.mxu0 0.0
        %439 = vmatpush.msra.mxu0 0.0
        %440 = vmatpush.msra.mxu0 0.0
        %441 = vmatpush.msra.mxu0 0.0
        %442 = vmatpush.msra.mxu0 0.0
        %443 = vmatpush.msra.mxu0 0.0
        %444 = vmatpush.msra.mxu0 0.0
        %445 = vmatpush.msra.mxu0 0.0
        %446 = vmatpush.msra.mxu0 0.0
        %447 = vmatpush.msra.mxu0 0.0
        %448 = vmatpush.msra.mxu0 0.0
        %449 = vmatpush.msra.mxu0 %v377
        %450 = vmatpush.msra.mxu0 %v375
        %451 = vmatpush.msra.mxu0 %v373
        %452 = vmatmul.f32.gmra.mxu0 %v402
        %v453 = vpop.f32.mrf.mxu0
        %v454 = vadd.f32 %v389, %v453
        %455 = vmatmul.f32.gmra.mxu0 %v405
        %v456 = vpop.f32.mrf.mxu0
        %v457 = vadd.f32 %v394, %v456
        %458 = vmatmul.f32.gmra.mxu0 %v408
        %v459 = vpop.f32.mrf.mxu0
        %v460 = vadd.f32 %v399, %v459
        %461 = vdwg.mxu0
        %v462 = vtanh.pop %v428
        %v463 = vtanh.pop %v454
        %v464 = vtanh.pop %v431
        %v465 = vtanh.pop %v457
        %v466 = vtanh.pop %v434
        %v467 = vtanh.pop %v460
        %v468 = vadd.f32 %v282, %v462
        %v469 = vadd.f32 %v283, %v463
        %v470 = vadd.f32 %v284, %v464
        %v471 = vadd.f32 %v285, %v465
        %v472 = vadd.f32 %v286, %v466
        %v473 = vadd.f32 %v287, %v467
        %s474 = scalar_lea.vmem %s1, 72
        %v475 = vld [vmem:[%s474] sm:$0xff]
        %v476 = vld [vmem:[%s474 + $0x8] sm:$0xff]
        %v477 = vld [vmem:[%s474 + $0x10] sm:$0xff]
        %s478 = scalar_lea.vmem %s2, 72
        %v479 = vld [vmem:[%s478] sm:$0xff]
        %v480 = vld [vmem:[%s478 + $0x8] sm:$0xff]
        %v481 = vld [vmem:[%s478 + $0x10] sm:$0xff]
        %483 = vset.pattern.permute.xlu0 0
        %484 = vperm.xlu0 %483, %v479
        %v485 = vpop.permute.xlu0 %484
        %488 = vset.pattern.permute.xlu0 0
        %489 = vperm.xlu0 %488, %v480
        %v490 = vpop.permute.xlu0 %489
        %493 = vset.pattern.permute.xlu0 0
        %494 = vperm.xlu0 %493, %v481
        %v495 = vpop.permute.xlu0 %494
        %v498 = vsel %vm220, %v475, 0
        %v501 = vsel %vm220, %v476, 0
        %v504 = vsel %vm220, %v477, 0
        %506 = vmatpush.msra.mxu0 0.0
        %507 = vmatpush.msra.mxu0 0.0
        %508 = vmatpush.msra.mxu0 0.0
        %509 = vmatpush.msra.mxu0 0.0
        %510 = vmatpush.msra.mxu0 0.0
        %511 = vmatpush.msra.mxu0 0.0
        %512 = vmatpush.msra.mxu0 0.0
        %513 = vmatpush.msra.mxu0 0.0
        %514 = vmatpush.msra.mxu0 0.0
        %515 = vmatpush.msra.mxu0 0.0
        %516 = vmatpush.msra.mxu0 0.0
        %517 = vmatpush.msra.mxu0 0.0
        %518 = vmatpush.msra.mxu0 0.0
        %519 = vmatpush.msra.mxu0 %v472
        %520 = vmatpush.msra.mxu0 %v470
        %521 = vmatpush.msra.mxu0 %v468
        %522 = vmatmul.f32.gmra.mxu0 %v498
        %v523 = vpop.f32.mrf.mxu0
        %v524 = vadd.f32 %v485, %v523
        %525 = vmatmul.f32.gmra.mxu0 %v501
        %v526 = vpop.f32.mrf.mxu0
        %v527 = vadd.f32 %v490, %v526
        %528 = vmatmul.f32.gmra.mxu0 %v504
        %v529 = vpop.f32.mrf.mxu0
        %v530 = vadd.f32 %v495, %v529
        %531 = vdwg.mxu0
        %532 = vmatpush.msra.mxu0 0.0
        %533 = vmatpush.msra.mxu0 0.0
        %534 = vmatpush.msra.mxu0 0.0
        %535 = vmatpush.msra.mxu0 0.0
        %536 = vmatpush.msra.mxu0 0.0
        %537 = vmatpush.msra.mxu0 0.0
        %538 = vmatpush.msra.mxu0 0.0
        %539 = vmatpush.msra.mxu0 0.0
        %540 = vmatpush.msra.mxu0 0.0
        %541 = vmatpush.msra.mxu0 0.0
        %542 = vmatpush.msra.mxu0 0.0
        %543 = vmatpush.msra.mxu0 0.0
        %544 = vmatpush.msra.mxu0 0.0
        %545 = vmatpush.msra.mxu0 %v473
        %546 = vmatpush.msra.mxu0 %v471
        %547 = vmatpush.msra.mxu0 %v469
        %548 = vmatmul.f32.gmra.mxu0 %v498
        %v549 = vpop.f32.mrf.mxu0
        %v550 = vadd.f32 %v485, %v549
        %551 = vmatmul.f32.gmra.mxu0 %v501
        %v552 = vpop.f32.mrf.mxu0
        %v553 = vadd.f32 %v490, %v552
        %554 = vmatmul.f32.gmra.mxu0 %v504
        %v555 = vpop.f32.mrf.mxu0
        %v556 = vadd.f32 %v495, %v555
        %557 = vdwg.mxu0
        %v558 = vtanh.pop %v524
        %v559 = vtanh.pop %v550
        %v560 = vtanh.pop %v527
        %v561 = vtanh.pop %v553
        %v562 = vtanh.pop %v530
        %v563 = vtanh.pop %v556
        %s564 = scalar_lea.vmem %s1, 96
        %v565 = vld [vmem:[%s564] sm:$0xff]
        %v566 = vld [vmem:[%s564 + $0x8] sm:$0xff]
        %v567 = vld [vmem:[%s564 + $0x10] sm:$0xff]
        %s568 = scalar_lea.vmem %s2, 96
        %v569 = vld [vmem:[%s568] sm:$0xff]
        %v570 = vld [vmem:[%s568 + $0x8] sm:$0xff]
        %v571 = vld [vmem:[%s568 + $0x10] sm:$0xff]
        %573 = vset.pattern.permute.xlu0 0
        %574 = vperm.xlu0 %573, %v569
        %v575 = vpop.permute.xlu0 %574
        %578 = vset.pattern.permute.xlu0 0
        %579 = vperm.xlu0 %578, %v570
        %v580 = vpop.permute.xlu0 %579
        %583 = vset.pattern.permute.xlu0 0
        %584 = vperm.xlu0 %583, %v571
        %v585 = vpop.permute.xlu0 %584
        %v588 = vsel %vm220, %v565, 0
        %v591 = vsel %vm220, %v566, 0
        %v594 = vsel %vm220, %v567, 0
        %596 = vmatpush.msra.mxu0 0.0
        %597 = vmatpush.msra.mxu0 0.0
        %598 = vmatpush.msra.mxu0 0.0
        %599 = vmatpush.msra.mxu0 0.0
        %600 = vmatpush.msra.mxu0 0.0
        %601 = vmatpush.msra.mxu0 0.0
        %602 = vmatpush.msra.mxu0 0.0
        %603 = vmatpush.msra.mxu0 0.0
        %604 = vmatpush.msra.mxu0 0.0
        %605 = vmatpush.msra.mxu0 0.0
        %606 = vmatpush.msra.mxu0 0.0
        %607 = vmatpush.msra.mxu0 0.0
        %608 = vmatpush.msra.mxu0 0.0
        %609 = vmatpush.msra.mxu0 %v562
        %610 = vmatpush.msra.mxu0 %v560
        %611 = vmatpush.msra.mxu0 %v558
        %612 = vmatmul.f32.gmra.mxu0 %v588
        %v613 = vpop.f32.mrf.mxu0
        %v614 = vadd.f32 %v575, %v613
        %615 = vmatmul.f32.gmra.mxu0 %v591
        %v616 = vpop.f32.mrf.mxu0
        %v617 = vadd.f32 %v580, %v616
        %618 = vmatmul.f32.gmra.mxu0 %v594
        %v619 = vpop.f32.mrf.mxu0
        %v620 = vadd.f32 %v585, %v619
        %621 = vdwg.mxu0
        %622 = vmatpush.msra.mxu0 0.0
        %623 = vmatpush.msra.mxu0 0.0
        %624 = vmatpush.msra.mxu0 0.0
        %625 = vmatpush.msra.mxu0 0.0
        %626 = vmatpush.msra.mxu0 0.0
        %627 = vmatpush.msra.mxu0 0.0
        %628 = vmatpush.msra.mxu0 0.0
        %629 = vmatpush.msra.mxu0 0.0
        %630 = vmatpush.msra.mxu0 0.0
        %631 = vmatpush.msra.mxu0 0.0
        %632 = vmatpush.msra.mxu0 0.0
        %633 = vmatpush.msra.mxu0 0.0
        %634 = vmatpush.msra.mxu0 0.0
        %635 = vmatpush.msra.mxu0 %v563
        %636 = vmatpush.msra.mxu0 %v561
        %637 = vmatpush.msra.mxu0 %v559
        %638 = vmatmul.f32.gmra.mxu0 %v588
        %v639 = vpop.f32.mrf.mxu0
        %v640 = vadd.f32 %v575, %v639
        %641 = vmatmul.f32.gmra.mxu0 %v591
        %v642 = vpop.f32.mrf.mxu0
        %v643 = vadd.f32 %v580, %v642
        %644 = vmatmul.f32.gmra.mxu0 %v594
        %v645 = vpop.f32.mrf.mxu0
        %v646 = vadd.f32 %v585, %v645
        %647 = vdwg.mxu0
        %v648 = vtanh.pop %v614
        %v649 = vtanh.pop %v640
        %v650 = vtanh.pop %v617
        %v651 = vtanh.pop %v643
        %v652 = vtanh.pop %v620
        %v653 = vtanh.pop %v646
        %v654 = vadd.f32 %v468, %v648
        %v655 = vadd.f32 %v469, %v649
        %v656 = vadd.f32 %v470, %v650
        %v657 = vadd.f32 %v471, %v651
        %v658 = vadd.f32 %v472, %v652
        %v659 = vadd.f32 %v473, %v653
        %s660 = scalar_lea.vmem %s1, 120
        %v661 = vld [vmem:[%s660] sm:$0xff]
        %v662 = vld [vmem:[%s660 + $0x8] sm:$0xff]
        %v663 = vld [vmem:[%s660 + $0x10] sm:$0xff]
        %s664 = scalar_lea.vmem %s2, 120
        %v665 = vld [vmem:[%s664] sm:$0xff]
        %v666 = vld [vmem:[%s664 + $0x8] sm:$0xff]
        %v667 = vld [vmem:[%s664 + $0x10] sm:$0xff]
        %669 = vset.pattern.permute.xlu0 0
        %670 = vperm.xlu0 %669, %v665
        %v671 = vpop.permute.xlu0 %670
        %674 = vset.pattern.permute.xlu0 0
        %675 = vperm.xlu0 %674, %v666
        %v676 = vpop.permute.xlu0 %675
        %678 = vset.pattern.permute.xlu0 0
        %679 = vperm.xlu0 %678, %v667
        %v680 = vpop.permute.xlu0 %679
        %v682 = vsel %vm220, %v661, 0
        %v685 = vsel %vm220, %v662, 0
        %v688 = vsel %vm220, %v663, 0
        %690 = vmatpush.msra.mxu0 0.0
        %691 = vmatpush.msra.mxu0 0.0
        %692 = vmatpush.msra.mxu0 0.0
        %693 = vmatpush.msra.mxu0 0.0
        %694 = vmatpush.msra.mxu0 0.0
        %695 = vmatpush.msra.mxu0 0.0
        %696 = vmatpush.msra.mxu0 0.0
        %697 = vmatpush.msra.mxu0 0.0
        %698 = vmatpush.msra.mxu0 0.0
        %699 = vmatpush.msra.mxu0 0.0
        %700 = vmatpush.msra.mxu0 0.0
        %701 = vmatpush.msra.mxu0 0.0
        %702 = vmatpush.msra.mxu0 0.0
        %703 = vmatpush.msra.mxu0 %v658
        %704 = vmatpush.msra.mxu0 %v656
        %705 = vmatpush.msra.mxu0 %v654
        %706 = vmatmul.f32.gmra.mxu0 %v682
        %v707 = vpop.f32.mrf.mxu0
        %v708 = vadd.f32 %v671, %v707
        %709 = vmatmul.f32.gmra.mxu0 %v685
        %v710 = vpop.f32.mrf.mxu0
        %711 = vmatmul.f32.gmra.mxu0 %v688
        %v712 = vpop.f32.mrf.mxu0
        %713 = vdwg.mxu0
        %714 = vmatpush.msra.mxu0 0.0
        %715 = vmatpush.msra.mxu0 0.0
        %716 = vmatpush.msra.mxu0 0.0
        %717 = vmatpush.msra.mxu0 0.0
        %718 = vmatpush.msra.mxu0 0.0
        %719 = vmatpush.msra.mxu0 0.0
        %720 = vmatpush.msra.mxu0 0.0
        %721 = vmatpush.msra.mxu0 0.0
        %722 = vmatpush.msra.mxu0 0.0
        %723 = vmatpush.msra.mxu0 0.0
        %724 = vmatpush.msra.mxu0 0.0
        %725 = vmatpush.msra.mxu0 0.0
        %726 = vmatpush.msra.mxu0 0.0
        %727 = vmatpush.msra.mxu0 %v659
        %728 = vmatpush.msra.mxu0 %v657
        %729 = vmatpush.msra.mxu0 %v655
        %730 = vmatmul.f32.gmra.mxu0 %v682
        %v731 = vpop.f32.mrf.mxu0
        %v732 = vadd.f32 %v671, %v731
        %733 = vmatmul.f32.gmra.mxu0 %v685
        %v734 = vpop.f32.mrf.mxu0
        %735 = vmatmul.f32.gmra.mxu0 %v688
        %v736 = vpop.f32.mrf.mxu0
        %737 = vdwg.mxu0
        %v740 = vrot.slane %v732, 7
        %vm741 = vcmask 1040384
        %v742 = vsel %vm741, %v708, %v740
        %v744 = vlaneseq
        %vm745 = vcmp.ge.s32.totalorder %v744, 0
        %vm746 = vcmp.lt.s32.totalorder %v744, 256
        %vm747 = vmand %vm745, %vm746
        %748 = vst.msk [vmem:[%s190] sm:$0x3] %vm747, %v742
        %s749 = sand.u32 %s96, 1
        %s750 = scalar_lea.sflag [#allocation4], %s749
        %s751 = sand.u32 %s96, 1
        %s752 = smul.addr %s751, 2
        %s753 = scalar_lea.vmem [#allocation5], %s752
        // Predicated region
        $region37: #{tpu_custom_call.1} parent=31 // pred_check
          %p754 = pneg %p106
        $region38: #{tpu_custom_call.1} parent=31 // pred_check_branch
          %756 = sbr.rel (%p754) target = $region40
        $region39: #{tpu_custom_call.1} parent=31 // pred_region
          %s757 = smul.u32 2, %s20
          %759 = vsyncadd %s750, 0
          %s760 = scalar_lea.hbm %s3, %s757
          %s762 = sshll.u32 %s753, 4
          %s763 = int_to_ptr.vmem [resolvable:$true] %s762
          %s764 = sshll.u32 %s760, 4
          %s765 = int_to_ptr.hbm [resolvable:$true] %s764
          %767 = dma.vmem_to_hbm [thread:$0]  %s763, 32, %s765, %s750
        $region40: #{tpu_custom_call.1} parent=31 // pred_fallthru
          _
      $region32: #{tpu_custom_call.1} parent=5 // pred_fallthru
        _
      %p768 = scmp.le.s32.totalorder 2, %s15
      // Predicated region
      $region41: #{tpu_custom_call.1} parent=5 // pred_check
        %p769 = pneg %p768
      $region42: #{tpu_custom_call.1} parent=5 // pred_check_branch
        %771 = sbr.rel (%p769) target = $region44
      $region43: #{tpu_custom_call.1} parent=5 // pred_region
        %s772 = ssub.s32 %s15, 2
        // Predicated region
        $region45: #{tpu_custom_call.1} parent=43 // pred_check
          %p773 = pneg %p112
        $region46: #{tpu_custom_call.1} parent=43 // pred_check_branch
          %775 = sbr.rel (%p773) target = $region48
        $region47: #{tpu_custom_call.1} parent=43 // pred_region
          %s776 = sand.u32 %s97, 1
          %s777 = scalar_lea.sflag [#allocation4], %s776
          %s778 = sand.u32 %s97, 1
          %s779 = smul.addr %s778, 2
          %s780 = scalar_lea.vmem [#allocation5], %s779
          %782 = dma.done %s777, 32
        $region48: #{tpu_custom_call.1} parent=43 // pred_fallthru
          _
      $region44: #{tpu_custom_call.1} parent=5 // pred_fallthru
        _
    $region6: #{tpu_custom_call.1} parent=1 // loop_footer
      %s19 = sadd.s32 1, %s15
    $region7: #{tpu_custom_call.1} parent=1 // loop_footer_branch
      %14 = sbr.rel target = $region3
    $region8: #{tpu_custom_call.1} parent=1 // loop_exit
      _
    %783 = vsyncpa [#allocation3], 1
    %s784 = scalar_lea.sflag [#allocation3], 1
    %785 = vsyncpa %s784, 1
    %786 = vsyncpa [#allocation4], 1
    %s787 = scalar_lea.sflag [#allocation4], 1
    %788 = vsyncpa %s787, 1

</llo_original>
